<compile_context>
chip_gen: v7x
topology: tpu7x:2x2x1
jax: 0.10.0
libtpu: 0.0.40
codegen_flags: <defaults>
</compile_context>

<pallas_src>
import jax
import jax.numpy as jnp
from jax.experimental import pallas as pl
from jax.experimental.pallas import tpu as pltpu


def _round_up(x, m):
    return (x + m - 1) // m * m


def _mlp_kernel(in_ref, goal_ref, w1a_ref, w1b_ref, b1_ref,
                w2_ref, b2_ref, w3_ref, b3_ref, o_ref):
    xi = in_ref[...]    # (TB, F)  bf16
    xg = goal_ref[...]  # (TB, F)  bf16

    # fc1: concat folded into two accumulating dots, f32 accumulation.
    h1 = jnp.dot(xi, w1a_ref[...], preferred_element_type=jnp.float32)
    h1 = h1 + jnp.dot(xg, w1b_ref[...], preferred_element_type=jnp.float32)
    h1 = jnp.maximum(h1 + b1_ref[...], 0.0)            # f32 bias + ReLU

    # fc2 + ReLU (bf16 MXU inputs, f32 epilogue).
    h2 = jnp.dot(h1.astype(jnp.bfloat16), w2_ref[...],
                 preferred_element_type=jnp.float32)
    h2 = jnp.maximum(h2 + b2_ref[...], 0.0)

    # fc3 (no activation), lane-dense f32 store.
    out = jnp.dot(h2.astype(jnp.bfloat16), w3_ref[...],
                  preferred_element_type=jnp.float32)
    o_ref[...] = out + b3_ref[...]


def prepare_params(params, feature_size):
    """Raw f32 params (W: (in,out), b: (1,out)) -> kernel params.

    Splits W1 for the folded concat, zero-pads every out-feature dim to a
    multiple of 128 lanes, stores weights in bf16 and biases in f32."""
    F = feature_size
    w1, b1 = params["w1"], params["b1"]
    w2, b2 = params["w2"], params["b2"]
    w3, b3 = params["w3"], params["b3"]
    H, H2, OUT = w1.shape[1], w2.shape[1], w3.shape[1]
    Hp, H2p, OUTp = (_round_up(d, 128) for d in (H, H2, OUT))

    def pad2(a, rows, cols):
        return jnp.pad(a, ((0, rows - a.shape[0]), (0, cols - a.shape[1])))

    w1p = pad2(w1, 2 * F, Hp).astype(jnp.bfloat16)
    return dict(
        w1a=w1p[:F], w1b=w1p[F:],
        b1=pad2(b1, 1, Hp).astype(jnp.float32),
        w2=pad2(w2, Hp, H2p).astype(jnp.bfloat16),
        b2=pad2(b2, 1, H2p).astype(jnp.float32),
        w3=pad2(w3, H2p, OUTp).astype(jnp.bfloat16),
        b3=pad2(b3, 1, OUTp).astype(jnp.float32),
    )


def bitflip_agent_forward(inputs, goals, kparams, *, bit_length, block_batch=512):
    """inputs, goals: (B, feature_size).  kparams: output of prepare_params."""
    B, F = inputs.shape
    xi = inputs.astype(jnp.bfloat16)   # bit vectors are exact in bf16
    xg = goals.astype(jnp.bfloat16)

    # Batch tile: multiple of 8 sublanes; pad B so every tile is full.
    TB = _round_up(min(block_batch, _round_up(B, 8)), 8)
    B_pad = _round_up(B, TB)
    if B_pad != B:
        xi = jnp.pad(xi, ((0, B_pad - B), (0, 0)))
        xg = jnp.pad(xg, ((0, B_pad - B), (0, 0)))

    OUTp = kparams["w3"].shape[1]
    grid = (B_pad // TB,)

    def row_spec(cols):
        return pl.BlockSpec((TB, cols), lambda i: (i, 0))

    def resident_spec(a):
        # Full array, constant block index -> stays in VMEM across all steps.
        return pl.BlockSpec(a.shape, lambda i: (0, 0))

    out = pl.pallas_call(
        _mlp_kernel,
        out_shape=jax.ShapeDtypeStruct((B_pad, OUTp), jnp.float32),
        grid=grid,
        in_specs=[row_spec(F), row_spec(F),
                  resident_spec(kparams["w1a"]), resident_spec(kparams["w1b"]),
                  resident_spec(kparams["b1"]),
                  resident_spec(kparams["w2"]), resident_spec(kparams["b2"]),
                  resident_spec(kparams["w3"]), resident_spec(kparams["b3"])],
        out_specs=row_spec(OUTp),
        compiler_params=pltpu.CompilerParams(
            dimension_semantics=("parallel",)),
    )(xi, xg, kparams["w1a"], kparams["w1b"], kparams["b1"],
      kparams["w2"], kparams["b2"], kparams["w3"], kparams["b3"])

    return out[:B, :bit_length]


def init_params(key, hidden_size, feature_size, bit_length):
    """Deterministic init matching nn.Linear shapes (W stored transposed)."""
    ks = jax.random.split(key, 6)

    def lin(kw, kb, fan_in, fan_out):
        bound = 1.0 / jnp.sqrt(fan_in)
        w = jax.random.uniform(kw, (fan_in, fan_out), jnp.float32, -bound, bound)
        b = jax.random.uniform(kb, (1, fan_out), jnp.float32, -bound, bound)
        return w, b

    w1, b1 = lin(ks[0], ks[1], feature_size * 2, hidden_size)
    w2, b2 = lin(ks[2], ks[3], hidden_size, hidden_size // 2)
    w3, b3 = lin(ks[4], ks[5], hidden_size // 2, bit_length)
    return {"w1": w1, "b1": b1, "w2": w2, "b2": b2, "w3": w3, "b3": b3}


if __name__ == "__main__":
    hidden_size = 32
    feature_size = 8
    bit_length = 8
    batch = 256          # small, but enough rows to exercise the batch grid

    key = jax.random.PRNGKey(0)
    k_in, k_goal, k_param = jax.random.split(key, 3)

    # BitflipAgent operates on bit vectors; use {0,1} floats.
    inputs = jax.random.bernoulli(k_in, 0.5, (batch, feature_size)).astype(jnp.float32)
    goals = jax.random.bernoulli(k_goal, 0.5, (batch, feature_size)).astype(jnp.float32)

    raw = init_params(k_param, hidden_size, feature_size, bit_length)
    kparams = prepare_params(raw, feature_size)

    out = bitflip_agent_forward(inputs, goals, kparams,
                                bit_length=bit_length, block_batch=128)
    jax.block_until_ready(out)

    # Pure-JAX reference with the same bf16-input / f32-accumulate discipline.
    xb = jnp.concatenate((inputs, goals), axis=1).astype(jnp.bfloat16)
    h1 = jnp.maximum(
        jnp.dot(xb, raw["w1"].astype(jnp.bfloat16),
                preferred_element_type=jnp.float32) + raw["b1"], 0.0)
    h2 = jnp.maximum(
        jnp.dot(h1.astype(jnp.bfloat16), raw["w2"].astype(jnp.bfloat16),
                preferred_element_type=jnp.float32) + raw["b2"], 0.0)
    ref = jnp.dot(h2.astype(jnp.bfloat16), raw["w3"].astype(jnp.bfloat16),
                  preferred_element_type=jnp.float32) + raw["b3"]

    assert out.shape == (batch, bit_length)
    assert jnp.allclose(out, ref, atol=2e-3, rtol=2e-3), \
        float(jnp.max(jnp.abs(out - ref)))

    print("KERNEL_OK")
</pallas_src>

<mosaic_0001>
module attributes {stable_mosaic.version = 11 : i64} {
  func.func @_mlp_kernel(%arg0: i32, %arg1: memref<128x8xbf16, #tpu.memory_space<vmem>>, %arg2: memref<128x8xbf16, #tpu.memory_space<vmem>>, %arg3: memref<8x128xbf16, #tpu.memory_space<vmem>>, %arg4: memref<8x128xbf16, #tpu.memory_space<vmem>>, %arg5: memref<1x128xf32, #tpu.memory_space<vmem>>, %arg6: memref<128x128xbf16, #tpu.memory_space<vmem>>, %arg7: memref<1x128xf32, #tpu.memory_space<vmem>>, %arg8: memref<128x128xbf16, #tpu.memory_space<vmem>>, %arg9: memref<1x128xf32, #tpu.memory_space<vmem>>, %arg10: memref<128x128xf32, #tpu.memory_space<vmem>>) attributes {dimension_semantics = [#tpu.dimension_semantics<parallel>], iteration_bounds = array<i64: 2>, scalar_prefetch = 0 : i64, scratch_operands = 0 : i64, tpu.core_type = #tpu.core_type<tc>, window_params = [{transform_indices = @transform_0, window_bounds = array<i64: 128, 8>}, {transform_indices = @transform_1, window_bounds = array<i64: 128, 8>}, {pipeline_mode = #tpu.pipeline_mode<synchronous>, transform_indices = @transform_2, window_bounds = array<i64: 8, 128>}, {pipeline_mode = #tpu.pipeline_mode<synchronous>, transform_indices = @transform_3, window_bounds = array<i64: 8, 128>}, {pipeline_mode = #tpu.pipeline_mode<synchronous>, transform_indices = @transform_4, window_bounds = array<i64: 1, 128>}, {pipeline_mode = #tpu.pipeline_mode<synchronous>, transform_indices = @transform_5, window_bounds = array<i64: 128, 128>}, {pipeline_mode = #tpu.pipeline_mode<synchronous>, transform_indices = @transform_6, window_bounds = array<i64: 1, 128>}, {pipeline_mode = #tpu.pipeline_mode<synchronous>, transform_indices = @transform_7, window_bounds = array<i64: 128, 128>}, {pipeline_mode = #tpu.pipeline_mode<synchronous>, transform_indices = @transform_8, window_bounds = array<i64: 1, 128>}, {transform_indices = @transform_9, window_bounds = array<i64: 128, 128>}]} {
    %c0 = arith.constant 0 : index
    %c0_0 = arith.constant 0 : index
    %0 = vector.load %arg1[%c0, %c0_0] : memref<128x8xbf16, #tpu.memory_space<vmem>>, vector<128x8xbf16>
    %c0_1 = arith.constant 0 : index
    %c0_2 = arith.constant 0 : index
    %1 = vector.load %arg2[%c0_1, %c0_2] : memref<128x8xbf16, #tpu.memory_space<vmem>>, vector<128x8xbf16>
    %c0_3 = arith.constant 0 : index
    %c0_4 = arith.constant 0 : index
    %2 = vector.load %arg3[%c0_3, %c0_4] : memref<8x128xbf16, #tpu.memory_space<vmem>>, vector<8x128xbf16>
    %cst = arith.constant dense<0.000000e+00> : vector<128x128xf32>
    %3 = tpu.matmul %0, %2, %cst {dimension_numbers = #tpu.dot_dimension_numbers<[1], [0], [0], [1], [0, 0, 1, 1], [], []>} : vector<128x8xbf16>, vector<8x128xbf16>, vector<128x128xf32> -> vector<128x128xf32>
    %c0_5 = arith.constant 0 : index
    %c0_6 = arith.constant 0 : index
    %4 = vector.load %arg4[%c0_5, %c0_6] : memref<8x128xbf16, #tpu.memory_space<vmem>>, vector<8x128xbf16>
    %cst_7 = arith.constant dense<0.000000e+00> : vector<128x128xf32>
    %5 = tpu.matmul %1, %4, %cst_7 {dimension_numbers = #tpu.dot_dimension_numbers<[1], [0], [0], [1], [0, 0, 1, 1], [], []>} : vector<128x8xbf16>, vector<8x128xbf16>, vector<128x128xf32> -> vector<128x128xf32>
    %6 = arith.addf %3, %5 : vector<128x128xf32>
    %c0_8 = arith.constant 0 : index
    %c0_9 = arith.constant 0 : index
    %7 = vector.load %arg5[%c0_8, %c0_9] : memref<1x128xf32, #tpu.memory_space<vmem>>, vector<1x128xf32>
    %8 = vector.broadcast %7 : vector<1x128xf32> to vector<128x128xf32>
    %9 = arith.addf %6, %8 : vector<128x128xf32>
    %cst_10 = arith.constant 0.000000e+00 : f32
    %10 = vector.broadcast %cst_10 : f32 to vector<128x128xf32>
    %11 = arith.maximumf %9, %10 : vector<128x128xf32>
    %12 = arith.truncf %11 : vector<128x128xf32> to vector<128x128xbf16>
    %c0_11 = arith.constant 0 : index
    %c0_12 = arith.constant 0 : index
    %13 = vector.load %arg6[%c0_11, %c0_12] : memref<128x128xbf16, #tpu.memory_space<vmem>>, vector<128x128xbf16>
    %cst_13 = arith.constant dense<0.000000e+00> : vector<128x128xf32>
    %14 = tpu.matmul %12, %13, %cst_13 {dimension_numbers = #tpu.dot_dimension_numbers<[1], [0], [0], [1], [0, 0, 1, 1], [], []>} : vector<128x128xbf16>, vector<128x128xbf16>, vector<128x128xf32> -> vector<128x128xf32>
    %c0_14 = arith.constant 0 : index
    %c0_15 = arith.constant 0 : index
    %15 = vector.load %arg7[%c0_14, %c0_15] : memref<1x128xf32, #tpu.memory_space<vmem>>, vector<1x128xf32>
    %16 = vector.broadcast %15 : vector<1x128xf32> to vector<128x128xf32>
    %17 = arith.addf %14, %16 : vector<128x128xf32>
    %cst_16 = arith.constant 0.000000e+00 : f32
    %18 = vector.broadcast %cst_16 : f32 to vector<128x128xf32>
    %19 = arith.maximumf %17, %18 : vector<128x128xf32>
    %20 = arith.truncf %19 : vector<128x128xf32> to vector<128x128xbf16>
    %c0_17 = arith.constant 0 : index
    %c0_18 = arith.constant 0 : index
    %21 = vector.load %arg8[%c0_17, %c0_18] : memref<128x128xbf16, #tpu.memory_space<vmem>>, vector<128x128xbf16>
    %cst_19 = arith.constant dense<0.000000e+00> : vector<128x128xf32>
    %22 = tpu.matmul %20, %21, %cst_19 {dimension_numbers = #tpu.dot_dimension_numbers<[1], [0], [0], [1], [0, 0, 1, 1], [], []>} : vector<128x128xbf16>, vector<128x128xbf16>, vector<128x128xf32> -> vector<128x128xf32>
    %c0_20 = arith.constant 0 : index
    %c0_21 = arith.constant 0 : index
    %23 = vector.load %arg9[%c0_20, %c0_21] : memref<1x128xf32, #tpu.memory_space<vmem>>, vector<1x128xf32>
    %24 = vector.broadcast %23 : vector<1x128xf32> to vector<128x128xf32>
    %25 = arith.addf %22, %24 : vector<128x128xf32>
    %c0_22 = arith.constant 0 : index
    %c0_23 = arith.constant 0 : index
    %26 = vector.load %arg10[%c0_22, %c0_23] : memref<128x128xf32, #tpu.memory_space<vmem>>, vector<128x128xf32>
    tpu.vector_store %arg10[%c0_22, %c0_23], %25 {strides = array<i32>} : memref<128x128xf32, #tpu.memory_space<vmem>>, vector<128x128xf32>,
    return
  }
  func.func @transform_0(%arg0: i32) -> (i32, i32) {
    %c0_i32 = arith.constant 0 : i32
    %c0_i32_0 = arith.constant 0 : i32
    return %arg0, %c0_i32 : i32, i32
  }
  func.func @transform_1(%arg0: i32) -> (i32, i32) {
    %c0_i32 = arith.constant 0 : i32
    %c0_i32_0 = arith.constant 0 : i32
    return %arg0, %c0_i32 : i32, i32
  }
  func.func @transform_2(%arg0: i32) -> (i32, i32) {
    %c0_i32 = arith.constant 0 : i32
    %c0_i32_0 = arith.constant 0 : i32
    %c0_i32_1 = arith.constant 0 : i32
    return %c0_i32, %c0_i32_0 : i32, i32
  }
  func.func @transform_3(%arg0: i32) -> (i32, i32) {
    %c0_i32 = arith.constant 0 : i32
    %c0_i32_0 = arith.constant 0 : i32
    %c0_i32_1 = arith.constant 0 : i32
    return %c0_i32, %c0_i32_0 : i32, i32
  }
  func.func @transform_4(%arg0: i32) -> (i32, i32) {
    %c0_i32 = arith.constant 0 : i32
    %c0_i32_0 = arith.constant 0 : i32
    %c0_i32_1 = arith.constant 0 : i32
    return %c0_i32, %c0_i32_0 : i32, i32
  }
  func.func @transform_5(%arg0: i32) -> (i32, i32) {
    %c0_i32 = arith.constant 0 : i32
    %c0_i32_0 = arith.constant 0 : i32
    %c0_i32_1 = arith.constant 0 : i32
    return %c0_i32, %c0_i32_0 : i32, i32
  }
  func.func @transform_6(%arg0: i32) -> (i32, i32) {
    %c0_i32 = arith.constant 0 : i32
    %c0_i32_0 = arith.constant 0 : i32
    %c0_i32_1 = arith.constant 0 : i32
    return %c0_i32, %c0_i32_0 : i32, i32
  }
  func.func @transform_7(%arg0: i32) -> (i32, i32) {
    %c0_i32 = arith.constant 0 : i32
    %c0_i32_0 = arith.constant 0 : i32
    %c0_i32_1 = arith.constant 0 : i32
    return %c0_i32, %c0_i32_0 : i32, i32
  }
  func.func @transform_8(%arg0: i32) -> (i32, i32) {
    %c0_i32 = arith.constant 0 : i32
    %c0_i32_0 = arith.constant 0 : i32
    %c0_i32_1 = arith.constant 0 : i32
    return %c0_i32, %c0_i32_0 : i32, i32
  }
  func.func @transform_9(%arg0: i32) -> (i32, i32) {
    %c0_i32 = arith.constant 0 : i32
    %c0_i32_0 = arith.constant 0 : i32
    return %arg0, %c0_i32 : i32, i32
  }
}

</mosaic_0001>

<llo_original>
// kernel: tpu_custom_call.1
$region0: #{tpu_custom_call.1}
  #allocation0 [shape = 'u32[]', space=smem, size = 0x4, offset = 0x4, fixed_abs, tag = 'smem constant byte address 0x4 - core index']
  #allocation1 [shape = 'u32[144,128]{1,0:T(1,128)}', space=vmem, size = 0x12000, scoped, tag = 'internal scratch']
  %s0 = inlined_call_operand.vmem [shape: bf16[256,8], index: 0, kind: input, shape index: {}]
  %s1 = inlined_call_operand.vmem [shape: bf16[256,8], index: 1, kind: input, shape index: {}]
  %s2 = inlined_call_operand.vmem [shape: bf16[8,128], index: 2, kind: input, shape index: {}]
  %s3 = inlined_call_operand.vmem [shape: bf16[8,128], index: 3, kind: input, shape index: {}]
  %s4 = inlined_call_operand.vmem [shape: f32[1,128], index: 4, kind: input, shape index: {}]
  %s5 = inlined_call_operand.vmem [shape: bf16[128,128], index: 5, kind: input, shape index: {}]
  %s6 = inlined_call_operand.vmem [shape: f32[1,128], index: 6, kind: input, shape index: {}]
  %s7 = inlined_call_operand.vmem [shape: bf16[128,128], index: 7, kind: input, shape index: {}]
  %s8 = inlined_call_operand.vmem [shape: f32[1,128], index: 8, kind: input, shape index: {}]
  %s9 = inlined_call_operand.hbm [shape: f32[256,128], index: 9, kind: output, shape index: {}]
  %s10 = sld [smem:[#allocation0]]
  $region69: #{tpu_custom_call.1} parent=0
    _
  %s12 = ssub.s32 1, %s10
  %s13 = scalar_select 0, %s12, %s10
  $region1: #{tpu_custom_call.1} parent=0
    #allocation2 [shape = 'u8[131072]{0}', space=vmem, size = 0x20000, scoped, tag = 'output window, operand 0']
    #allocation3 [shape = 's32[2]{0}', space=sflag, size = 0x8, scoped, tag = 'scoped memory for tpu_custom_call.1']
    %14 = vsyncpa [#allocation3], 0
    %s15 = scalar_lea.sflag [#allocation3], 1
    %16 = vsyncpa %s15, 0
    loop: start=0, step=1, limit=4
    $region2: #{tpu_custom_call.1} parent=1 // loop_pre_header
      _
    $region3: #{tpu_custom_call.1} parent=1 // loop_header
      %s18 = sphi 0, %s22
      %p19 = scmp.ge.s32.totalorder %s18, 4
      %s28 = sphi 0, %s30
      %s31 = sphi 0, %s28
      %s32 = sphi 0, %s31
      %s48 = sphi 0, %s32
      %s54 = sphi 0, %s56
      %s57 = sphi 0, %s54
      %s58 = sphi 0, %s57
      %s74 = sphi 0, %s58
      %s78 = sphi 0, %s78
      %s80 = sphi 0, %s78
      %s81 = sphi 0, %s80
      %s95 = sphi 0, %s81
      %s99 = sphi 0, %s99
      %s101 = sphi 0, %s99
      %s102 = sphi 0, %s101
      %s116 = sphi 0, %s102
      %s120 = sphi 0, %s120
      %s122 = sphi 0, %s120
      %s123 = sphi 0, %s122
      %s137 = sphi 0, %s123
      %s141 = sphi 0, %s141
      %s143 = sphi 0, %s141
      %s144 = sphi 0, %s143
      %s158 = sphi 0, %s144
      %s162 = sphi 0, %s162
      %s164 = sphi 0, %s162
      %s165 = sphi 0, %s164
      %s179 = sphi 0, %s165
      %s183 = sphi 0, %s183
      %s185 = sphi 0, %s183
      %s186 = sphi 0, %s185
      %s200 = sphi 0, %s186
      %s204 = sphi 0, %s204
      %s206 = sphi 0, %s204
      %s207 = sphi 0, %s206
      %s221 = sphi 0, %s207
      %s227 = sphi 0, %s229
      %s230 = sphi 0, %s227
      %s231 = sphi 0, %s230
      %s247 = sphi 0, %s231
    $region4: #{tpu_custom_call.1} parent=1 // loop_header_branch
      %21 = sbr.rel (%p19) target = $region8
    $region5: #{tpu_custom_call.1} parent=1 // loop_body
      %s23 = ssub.s32 %s18, 1
      %s24 = ssub.s32 %s18, 2
      %s25 = sadd.s32 %s18, 1
      %s26 = ssub.s32 %s18, %s25
      %p27 = scmp.eq.s32.totalorder %s26, 0
      %s29 = sadd.s32 %s28, 1
      %s30 = scalar_select %p27, %s28, %s29
      %p33 = pneg %p27
      %p34 = scmp.eq.s32.totalorder %s18, 1
      %p35 = por %p33, %p34
      %p36 = scmp.ne.s32.totalorder %s28, %s31
      %p37 = scmp.eq.s32.totalorder %s18, 0
      %p38 = por %p36, %p37
      %p39 = scmp.ne.s32.totalorder %s28, %s31
      %p40 = scmp.eq.s32.totalorder %s23, 1
      %p41 = por %p39, %p40
      %p42 = scmp.ne.s32.totalorder %s31, %s32
      %p43 = scmp.eq.s32.totalorder %s23, 0
      %p44 = por %p42, %p43
      %p45 = scmp.ne.s32.totalorder %s31, %s32
      %p46 = scmp.eq.s32.totalorder %s24, 1
      %p47 = por %p45, %p46
      %p49 = scmp.ne.s32.totalorder %s32, %s48
      %p50 = scmp.eq.s32.totalorder %s24, 0
      %p51 = por %p49, %p50
      %s52 = ssub.s32 %s18, %s25
      %p53 = scmp.eq.s32.totalorder %s52, 0
      %s55 = sadd.s32 %s54, 1
      %s56 = scalar_select %p53, %s54, %s55
      %p59 = pneg %p53
      %p60 = scmp.eq.s32.totalorder %s18, 1
      %p61 = por %p59, %p60
      %p62 = scmp.ne.s32.totalorder %s54, %s57
      %p63 = scmp.eq.s32.totalorder %s18, 0
      %p64 = por %p62, %p63
      %p65 = scmp.ne.s32.totalorder %s54, %s57
      %p66 = scmp.eq.s32.totalorder %s23, 1
      %p67 = por %p65, %p66
      %p68 = scmp.ne.s32.totalorder %s57, %s58
      %p69 = scmp.eq.s32.totalorder %s23, 0
      %p70 = por %p68, %p69
      %p71 = scmp.ne.s32.totalorder %s57, %s58
      %p72 = scmp.eq.s32.totalorder %s24, 1
      %p73 = por %p71, %p72
      %p75 = scmp.ne.s32.totalorder %s58, %s74
      %p76 = scmp.eq.s32.totalorder %s24, 0
      %p77 = por %p75, %p76
      %s79 = sadd.s32 %s78, 1
      %p82 = scmp.eq.s32.totalorder %s18, 1
      %p83 = scmp.ne.s32.totalorder %s78, %s80
      %p84 = scmp.eq.s32.totalorder %s18, 0
      %p85 = por %p83, %p84
      %p86 = scmp.ne.s32.totalorder %s78, %s80
      %p87 = scmp.eq.s32.totalorder %s23, 1
      %p88 = por %p86, %p87
      %p89 = scmp.ne.s32.totalorder %s80, %s81
      %p90 = scmp.eq.s32.totalorder %s23, 0
      %p91 = por %p89, %p90
      %p92 = scmp.ne.s32.totalorder %s80, %s81
      %p93 = scmp.eq.s32.totalorder %s24, 1
      %p94 = por %p92, %p93
      %p96 = scmp.ne.s32.totalorder %s81, %s95
      %p97 = scmp.eq.s32.totalorder %s24, 0
      %p98 = por %p96, %p97
      %s100 = sadd.s32 %s99, 1
      %p103 = scmp.eq.s32.totalorder %s18, 1
      %p104 = scmp.ne.s32.totalorder %s99, %s101
      %p105 = scmp.eq.s32.totalorder %s18, 0
      %p106 = por %p104, %p105
      %p107 = scmp.ne.s32.totalorder %s99, %s101
      %p108 = scmp.eq.s32.totalorder %s23, 1
      %p109 = por %p107, %p108
      %p110 = scmp.ne.s32.totalorder %s101, %s102
      %p111 = scmp.eq.s32.totalorder %s23, 0
      %p112 = por %p110, %p111
      %p113 = scmp.ne.s32.totalorder %s101, %s102
      %p114 = scmp.eq.s32.totalorder %s24, 1
      %p115 = por %p113, %p114
      %p117 = scmp.ne.s32.totalorder %s102, %s116
      %p118 = scmp.eq.s32.totalorder %s24, 0
      %p119 = por %p117, %p118
      %s121 = sadd.s32 %s120, 1
      %p124 = scmp.eq.s32.totalorder %s18, 1
      %p125 = scmp.ne.s32.totalorder %s120, %s122
      %p126 = scmp.eq.s32.totalorder %s18, 0
      %p127 = por %p125, %p126
      %p128 = scmp.ne.s32.totalorder %s120, %s122
      %p129 = scmp.eq.s32.totalorder %s23, 1
      %p130 = por %p128, %p129
      %p131 = scmp.ne.s32.totalorder %s122, %s123
      %p132 = scmp.eq.s32.totalorder %s23, 0
      %p133 = por %p131, %p132
      %p134 = scmp.ne.s32.totalorder %s122, %s123
      %p135 = scmp.eq.s32.totalorder %s24, 1
      %p136 = por %p134, %p135
      %p138 = scmp.ne.s32.totalorder %s123, %s137
      %p139 = scmp.eq.s32.totalorder %s24, 0
      %p140 = por %p138, %p139
      %s142 = sadd.s32 %s141, 1
      %p145 = scmp.eq.s32.totalorder %s18, 1
      %p146 = scmp.ne.s32.totalorder %s141, %s143
      %p147 = scmp.eq.s32.totalorder %s18, 0
      %p148 = por %p146, %p147
      %p149 = scmp.ne.s32.totalorder %s141, %s143
      %p150 = scmp.eq.s32.totalorder %s23, 1
      %p151 = por %p149, %p150
      %p152 = scmp.ne.s32.totalorder %s143, %s144
      %p153 = scmp.eq.s32.totalorder %s23, 0
      %p154 = por %p152, %p153
      %p155 = scmp.ne.s32.totalorder %s143, %s144
      %p156 = scmp.eq.s32.totalorder %s24, 1
      %p157 = por %p155, %p156
      %p159 = scmp.ne.s32.totalorder %s144, %s158
      %p160 = scmp.eq.s32.totalorder %s24, 0
      %p161 = por %p159, %p160
      %s163 = sadd.s32 %s162, 1
      %p166 = scmp.eq.s32.totalorder %s18, 1
      %p167 = scmp.ne.s32.totalorder %s162, %s164
      %p168 = scmp.eq.s32.totalorder %s18, 0
      %p169 = por %p167, %p168
      %p170 = scmp.ne.s32.totalorder %s162, %s164
      %p171 = scmp.eq.s32.totalorder %s23, 1
      %p172 = por %p170, %p171
      %p173 = scmp.ne.s32.totalorder %s164, %s165
      %p174 = scmp.eq.s32.totalorder %s23, 0
      %p175 = por %p173, %p174
      %p176 = scmp.ne.s32.totalorder %s164, %s165
      %p177 = scmp.eq.s32.totalorder %s24, 1
      %p178 = por %p176, %p177
      %p180 = scmp.ne.s32.totalorder %s165, %s179
      %p181 = scmp.eq.s32.totalorder %s24, 0
      %p182 = por %p180, %p181
      %s184 = sadd.s32 %s183, 1
      %p187 = scmp.eq.s32.totalorder %s18, 1
      %p188 = scmp.ne.s32.totalorder %s183, %s185
      %p189 = scmp.eq.s32.totalorder %s18, 0
      %p190 = por %p188, %p189
      %p191 = scmp.ne.s32.totalorder %s183, %s185
      %p192 = scmp.eq.s32.totalorder %s23, 1
      %p193 = por %p191, %p192
      %p194 = scmp.ne.s32.totalorder %s185, %s186
      %p195 = scmp.eq.s32.totalorder %s23, 0
      %p196 = por %p194, %p195
      %p197 = scmp.ne.s32.totalorder %s185, %s186
      %p198 = scmp.eq.s32.totalorder %s24, 1
      %p199 = por %p197, %p198
      %p201 = scmp.ne.s32.totalorder %s186, %s200
      %p202 = scmp.eq.s32.totalorder %s24, 0
      %p203 = por %p201, %p202
      %s205 = sadd.s32 %s204, 1
      %p208 = scmp.eq.s32.totalorder %s18, 1
      %p209 = scmp.ne.s32.totalorder %s204, %s206
      %p210 = scmp.eq.s32.totalorder %s18, 0
      %p211 = por %p209, %p210
      %p212 = scmp.ne.s32.totalorder %s204, %s206
      %p213 = scmp.eq.s32.totalorder %s23, 1
      %p214 = por %p212, %p213
      %p215 = scmp.ne.s32.totalorder %s206, %s207
      %p216 = scmp.eq.s32.totalorder %s23, 0
      %p217 = por %p215, %p216
      %p218 = scmp.ne.s32.totalorder %s206, %s207
      %p219 = scmp.eq.s32.totalorder %s24, 1
      %p220 = por %p218, %p219
      %p222 = scmp.ne.s32.totalorder %s207, %s221
      %p223 = scmp.eq.s32.totalorder %s24, 0
      %p224 = por %p222, %p223
      %s225 = ssub.s32 %s18, %s25
      %p226 = scmp.eq.s32.totalorder %s225, 0
      %s228 = sadd.s32 %s227, 1
      %s229 = scalar_select %p226, %s227, %s228
      %p232 = pneg %p226
      %p233 = scmp.eq.s32.totalorder %s18, 1
      %p234 = por %p232, %p233
      %p235 = scmp.ne.s32.totalorder %s227, %s230
      %p236 = scmp.eq.s32.totalorder %s18, 0
      %p237 = por %p235, %p236
      %p238 = scmp.ne.s32.totalorder %s227, %s230
      %p239 = scmp.eq.s32.totalorder %s23, 1
      %p240 = por %p238, %p239
      %p241 = scmp.ne.s32.totalorder %s230, %s231
      %p242 = scmp.eq.s32.totalorder %s23, 0
      %p243 = por %p241, %p242
      %p244 = scmp.ne.s32.totalorder %s230, %s231
      %p245 = scmp.eq.s32.totalorder %s24, 1
      %p246 = por %p244, %p245
      %p248 = scmp.ne.s32.totalorder %s231, %s247
      %p249 = scmp.eq.s32.totalorder %s24, 0
      %p250 = por %p248, %p249
      %p251 = scmp.le.s32.totalorder 1, %s18
      %p252 = scmp.lt.s32.totalorder %s18, 3
      %p253 = pnand %p251, %p252
      %p254 = pneg %p253
      // Predicated region
      $region9: #{tpu_custom_call.1} parent=5 // pred_check
        _
      $region10: #{tpu_custom_call.1} parent=5 // pred_check_branch
        %256 = sbr.rel (%p253) target = $region12
      $region11: #{tpu_custom_call.1} parent=5 // pred_region
        %s257 = ssub.s32 %s18, 1
        // Predicated region
        $region13: #{tpu_custom_call.1} parent=11 // pred_check
          %p258 = pneg %p91
        $region14: #{tpu_custom_call.1} parent=11 // pred_check_branch
          %260 = sbr.rel (%p258) target = $region16
        $region15: #{tpu_custom_call.1} parent=11 // pred_region
          _
        $region16: #{tpu_custom_call.1} parent=11 // pred_fallthru
          _
        // Predicated region
        $region17: #{tpu_custom_call.1} parent=11 // pred_check
          %p261 = pneg %p112
        $region18: #{tpu_custom_call.1} parent=11 // pred_check_branch
          %263 = sbr.rel (%p261) target = $region20
        $region19: #{tpu_custom_call.1} parent=11 // pred_region
          _
        $region20: #{tpu_custom_call.1} parent=11 // pred_fallthru
          _
        // Predicated region
        $region21: #{tpu_custom_call.1} parent=11 // pred_check
          %p264 = pneg %p133
        $region22: #{tpu_custom_call.1} parent=11 // pred_check_branch
          %266 = sbr.rel (%p264) target = $region24
        $region23: #{tpu_custom_call.1} parent=11 // pred_region
          _
        $region24: #{tpu_custom_call.1} parent=11 // pred_fallthru
          _
        // Predicated region
        $region25: #{tpu_custom_call.1} parent=11 // pred_check
          %p267 = pneg %p154
        $region26: #{tpu_custom_call.1} parent=11 // pred_check_branch
          %269 = sbr.rel (%p267) target = $region28
        $region27: #{tpu_custom_call.1} parent=11 // pred_region
          _
        $region28: #{tpu_custom_call.1} parent=11 // pred_fallthru
          _
        // Predicated region
        $region29: #{tpu_custom_call.1} parent=11 // pred_check
          %p270 = pneg %p175
        $region30: #{tpu_custom_call.1} parent=11 // pred_check_branch
          %272 = sbr.rel (%p270) target = $region32
        $region31: #{tpu_custom_call.1} parent=11 // pred_region
          _
        $region32: #{tpu_custom_call.1} parent=11 // pred_fallthru
          _
        // Predicated region
        $region33: #{tpu_custom_call.1} parent=11 // pred_check
          %p273 = pneg %p196
        $region34: #{tpu_custom_call.1} parent=11 // pred_check_branch
          %275 = sbr.rel (%p273) target = $region36
        $region35: #{tpu_custom_call.1} parent=11 // pred_region
          _
        $region36: #{tpu_custom_call.1} parent=11 // pred_fallthru
          _
        // Predicated region
        $region37: #{tpu_custom_call.1} parent=11 // pred_check
          %p276 = pneg %p217
        $region38: #{tpu_custom_call.1} parent=11 // pred_check_branch
          %278 = sbr.rel (%p276) target = $region40
        $region39: #{tpu_custom_call.1} parent=11 // pred_region
          _
        $region40: #{tpu_custom_call.1} parent=11 // pred_fallthru
          _
      $region12: #{tpu_custom_call.1} parent=5 // pred_fallthru
        _
      %p279 = scmp.lt.s32.totalorder %s18, 2
      // Predicated region
      $region41: #{tpu_custom_call.1} parent=5 // pred_check
        %p280 = pneg %p279
      $region42: #{tpu_custom_call.1} parent=5 // pred_check_branch
        %282 = sbr.rel (%p280) target = $region44
      $region43: #{tpu_custom_call.1} parent=5 // pred_region
        // Predicated region
        $region45: #{tpu_custom_call.1} parent=43 // pred_check
          %p283 = pneg %p38
        $region46: #{tpu_custom_call.1} parent=43 // pred_check_branch
          %285 = sbr.rel (%p283) target = $region48
        $region47: #{tpu_custom_call.1} parent=43 // pred_region
          %s286 = smul.u32 16, %s18
          %p287 = scmp.lt.s32.totalorder %s286, 31
          %s288 = scalar_select %p287, %s286, 31
          %s289 = smul.addr %s288, 4
          %s290 = scalar_lea.vmem %s0, %s289
          %s291 = smul.u32 16, %s18
        $region48: #{tpu_custom_call.1} parent=43 // pred_fallthru
          _
        // Predicated region
        $region49: #{tpu_custom_call.1} parent=43 // pred_check
          %p292 = pneg %p64
        $region50: #{tpu_custom_call.1} parent=43 // pred_check_branch
          %294 = sbr.rel (%p292) target = $region52
        $region51: #{tpu_custom_call.1} parent=43 // pred_region
          %s295 = smul.u32 16, %s18
          %p296 = scmp.lt.s32.totalorder %s295, 31
          %s297 = scalar_select %p296, %s295, 31
          %s298 = smul.addr %s297, 4
          %s299 = scalar_lea.vmem %s1, %s298
          %s300 = smul.u32 16, %s18
        $region52: #{tpu_custom_call.1} parent=43 // pred_fallthru
          _
      $region44: #{tpu_custom_call.1} parent=5 // pred_fallthru
        _
      %p301 = scmp.le.s32.totalorder 1, %s18
      %p302 = scmp.lt.s32.totalorder %s18, 3
      %p303 = pnand %p301, %p302
      %p304 = pneg %p303
      // Predicated region
      $region53: #{tpu_custom_call.1} parent=5 // pred_check
        _
      $region54: #{tpu_custom_call.1} parent=5 // pred_check_branch
        %306 = sbr.rel (%p303) target = $region56
      $region55: #{tpu_custom_call.1} parent=5 // pred_region
        %s307 = ssub.s32 %s18, 1
        %s308 = smul.u32 16, %s23
        %p309 = scmp.lt.s32.totalorder %s308, 31
        %s310 = scalar_select %p309, %s308, 31
        %s311 = smul.addr %s310, 4
        %s312 = scalar_lea.vmem %s0, %s311
        %p313 = pneg %p44
        %p314 = pneg %p41
        %s315 = smul.u32 16, %s23
        %p316 = scmp.lt.s32.totalorder %s315, 31
        %s317 = scalar_select %p316, %s315, 31
        %s318 = smul.addr %s317, 4
        %s319 = scalar_lea.vmem %s1, %s318
        %p320 = pneg %p70
        %p321 = pneg %p67
        %p322 = pneg %p91
        %p323 = pneg %p88
        %p324 = pneg %p112
        %p325 = pneg %p109
        %p326 = pneg %p133
        %p327 = pneg %p130
        %p328 = pneg %p154
        %p329 = pneg %p151
        %p330 = pneg %p175
        %p331 = pneg %p172
        %p332 = pneg %p196
        %p333 = pneg %p193
        %p334 = pneg %p217
        %p335 = pneg %p214
        %p336 = pneg %p243
        %p337 = pneg %p240
        %s338 = sand.u32 %s230, 1
        %s339 = scalar_lea.sflag [#allocation3], %s338
        %s340 = sand.u32 %s230, 1
        %s341 = smul.addr %s340, 128
        %s342 = scalar_lea.vmem [#allocation2], %s341
        %s343 = smul.u32 16, %s23
        %p344 = scmp.lt.s32.totalorder %s343, 31
        %s345 = scalar_select %p344, %s343, 31
        %s346 = smul.addr %s345, 4
        %s347 = scalar_lea.vmem %s0, %s346
        %s348 = smul.u32 16, %s23
        %s349 = smul.u32 16, %s23
        %p350 = scmp.lt.s32.totalorder %s349, 31
        %s351 = scalar_select %p350, %s349, 31
        %s352 = smul.addr %s351, 4
        %s353 = scalar_lea.vmem %s1, %s352
        %s354 = smul.u32 16, %s23
        %s355 = smul.u32 16, %s23
        %v357 = vld [vmem:[%s347] sm:$0xf]
        %v358 = vld [vmem:[%s347 + $0x4] sm:$0xf]
        %v359 = vld [vmem:[%s347 + $0x8] sm:$0xf]
        %v360 = vld [vmem:[%s347 + $0xc] sm:$0xf]
        %v361 = vld [vmem:[%s347 + $0x10] sm:$0xf]
        %v362 = vld [vmem:[%s347 + $0x14] sm:$0xf]
        %v363 = vld [vmem:[%s347 + $0x18] sm:$0xf]
        %v364 = vld [vmem:[%s347 + $0x1c] sm:$0xf]
        %v365 = vld [vmem:[%s347 + $0x20] sm:$0xf]
        %v366 = vld [vmem:[%s347 + $0x24] sm:$0xf]
        %v367 = vld [vmem:[%s347 + $0x28] sm:$0xf]
        %v368 = vld [vmem:[%s347 + $0x2c] sm:$0xf]
        %v369 = vld [vmem:[%s347 + $0x30] sm:$0xf]
        %v370 = vld [vmem:[%s347 + $0x34] sm:$0xf]
        %v371 = vld [vmem:[%s347 + $0x38] sm:$0xf]
        %v372 = vld [vmem:[%s347 + $0x3c] sm:$0xf]
        %v373 = vld [vmem:[%s353] sm:$0xf]
        %v374 = vld [vmem:[%s353 + $0x4] sm:$0xf]
        %v375 = vld [vmem:[%s353 + $0x8] sm:$0xf]
        %v376 = vld [vmem:[%s353 + $0xc] sm:$0xf]
        %v377 = vld [vmem:[%s353 + $0x10] sm:$0xf]
        %v378 = vld [vmem:[%s353 + $0x14] sm:$0xf]
        %v379 = vld [vmem:[%s353 + $0x18] sm:$0xf]
        %v380 = vld [vmem:[%s353 + $0x1c] sm:$0xf]
        %v381 = vld [vmem:[%s353 + $0x20] sm:$0xf]
        %v382 = vld [vmem:[%s353 + $0x24] sm:$0xf]
        %v383 = vld [vmem:[%s353 + $0x28] sm:$0xf]
        %v384 = vld [vmem:[%s353 + $0x2c] sm:$0xf]
        %v385 = vld [vmem:[%s353 + $0x30] sm:$0xf]
        %v386 = vld [vmem:[%s353 + $0x34] sm:$0xf]
        %v387 = vld [vmem:[%s353 + $0x38] sm:$0xf]
        %v388 = vld [vmem:[%s353 + $0x3c] sm:$0xf]
        %v389 = vld [vmem:[%s2] sm:$0xf]
        %v390 = vld [vmem:[%s3] sm:$0xf]
        %v407 = vunpack.c.l.b16 %v373
        %v408 = vunpack.c.l.b16 %v374
        %v409 = vunpack.c.l.b16 %v375
        %v410 = vunpack.c.l.b16 %v376
        %v411 = vunpack.c.l.b16 %v377
        %v412 = vunpack.c.l.b16 %v378
        %v413 = vunpack.c.l.b16 %v379
        %v414 = vunpack.c.l.b16 %v380
        %v415 = vunpack.c.l.b16 %v381
        %v416 = vunpack.c.l.b16 %v382
        %v417 = vunpack.c.l.b16 %v383
        %v418 = vunpack.c.l.b16 %v384
        %v419 = vunpack.c.l.b16 %v385
        %v420 = vunpack.c.l.b16 %v386
        %v421 = vunpack.c.l.b16 %v387
        %v422 = vunpack.c.l.b16 %v388
        %v423 = vpack.c.b16 %v408, %v407
        %v424 = vpack.c.b16 %v410, %v409
        %v425 = vpack.c.b16 %v412, %v411
        %v426 = vpack.c.b16 %v414, %v413
        %v427 = vpack.c.b16 %v416, %v415
        %v428 = vpack.c.b16 %v418, %v417
        %v429 = vpack.c.b16 %v420, %v419
        %v430 = vpack.c.b16 %v422, %v421
        %vm431 = vcmask 64512
        %v433 = vsel %vm431, %v423, 0
        %v436 = vsel %vm431, %v424, 0
        %v439 = vsel %vm431, %v425, 0
        %v442 = vsel %vm431, %v426, 0
        %v445 = vsel %vm431, %v427, 0
        %v448 = vsel %vm431, %v428, 0
        %v451 = vsel %vm431, %v429, 0
        %v454 = vsel %vm431, %v430, 0
        %vm456 = vcmask 1043456
        %v458 = vsel %vm456, %v390, 0
        %460 = vmatprep.subr.bf16.mxu0 0
        %461 = vmatpush1.bf16.msra.mxu0 %v458
        %462 = vmatprep.subr.bf16.mxu0 0
        %463 = vmatpush1.bf16.msra.mxu0 0
        %464 = vmatprep.subr.bf16.mxu0 0
        %465 = vmatpush1.bf16.msra.mxu0 0
        %466 = vmatprep.subr.bf16.mxu0 0
        %467 = vmatpush1.bf16.msra.mxu0 0
        %468 = vmatprep.subr.bf16.mxu0 0
        %469 = vmatpush1.bf16.msra.mxu0 0
        %470 = vmatprep.subr.bf16.mxu0 0
        %471 = vmatpush1.bf16.msra.mxu0 0
        %472 = vmatprep.subr.bf16.mxu0 0
        %473 = vmatpush1.bf16.msra.mxu0 0
        %474 = vmatprep.subr.bf16.mxu0 0
        %475 = vmatpush1.bf16.msra.mxu0 0
        %476 = vmatprep.subr.bf16.mxu0 0
        %477 = vmatpush1.bf16.msra.mxu0 0
        %478 = vmatprep.subr.bf16.mxu0 0
        %479 = vmatpush1.bf16.msra.mxu0 0
        %480 = vmatprep.subr.bf16.mxu0 0
        %481 = vmatpush1.bf16.msra.mxu0 0
        %482 = vmatprep.subr.bf16.mxu0 0
        %483 = vmatpush1.bf16.msra.mxu0 0
        %484 = vmatprep.subr.bf16.mxu0 0
        %485 = vmatpush1.bf16.msra.mxu0 0
        %486 = vmatprep.subr.bf16.mxu0 0
        %487 = vmatpush1.bf16.msra.mxu0 0
        %488 = vmatprep.subr.bf16.mxu0 0
        %489 = vmatpush1.bf16.msra.mxu0 0
        %490 = vmatprep.subr.bf16.mxu0 0
        %491 = vmatpush1.bf16.msra.mxu0 0
        %492 = vmatprep.mubr.bf16.mxu0 0
        %493 = vmatmul.mubr.bf16.gmra.mrb[0].mxu0 %v433
        %v494 = vpop.f32.mrb[0].mxu0
        %v495 = vadd.f32 0.0, %v494
        %v496 = vpop.f32.mrb[0].mxu0
        %v497 = vpop.f32.mrb[0].mxu0
        %v498 = vadd.f32 0.0, %v497
        %v499 = vpop.f32.mrb[0].mxu0
        %500 = vmatprep.mubr.bf16.mxu0 0
        %501 = vmatmul.mubr.bf16.gmra.mrb[0].mxu0 %v436
        %v502 = vpop.f32.mrb[0].mxu0
        %v503 = vadd.f32 0.0, %v502
        %v504 = vpop.f32.mrb[0].mxu0
        %v505 = vpop.f32.mrb[0].mxu0
        %v506 = vadd.f32 0.0, %v505
        %v507 = vpop.f32.mrb[0].mxu0
        %508 = vmatprep.mubr.bf16.mxu0 0
        %509 = vmatmul.mubr.bf16.gmra.mrb[0].mxu0 %v439
        %v510 = vpop.f32.mrb[0].mxu0
        %v511 = vadd.f32 0.0, %v510
        %v512 = vpop.f32.mrb[0].mxu0
        %v513 = vpop.f32.mrb[0].mxu0
        %v514 = vadd.f32 0.0, %v513
        %v515 = vpop.f32.mrb[0].mxu0
        %516 = vmatprep.mubr.bf16.mxu0 0
        %517 = vmatmul.mubr.bf16.gmra.mrb[0].mxu0 %v442
        %v518 = vpop.f32.mrb[0].mxu0
        %v519 = vadd.f32 0.0, %v518
        %v520 = vpop.f32.mrb[0].mxu0
        %v521 = vpop.f32.mrb[0].mxu0
        %v522 = vadd.f32 0.0, %v521
        %v523 = vpop.f32.mrb[0].mxu0
        %524 = vmatprep.mubr.bf16.mxu0 0
        %525 = vmatmul.mubr.bf16.gmra.mrb[0].mxu0 %v445
        %v526 = vpop.f32.mrb[0].mxu0
        %v527 = vadd.f32 0.0, %v526
        %v528 = vpop.f32.mrb[0].mxu0
        %v529 = vpop.f32.mrb[0].mxu0
        %v530 = vadd.f32 0.0, %v529
        %v531 = vpop.f32.mrb[0].mxu0
        %532 = vmatprep.mubr.bf16.mxu0 0
        %533 = vmatmul.mubr.bf16.gmra.mrb[0].mxu0 %v448
        %v534 = vpop.f32.mrb[0].mxu0
        %v535 = vadd.f32 0.0, %v534
        %v536 = vpop.f32.mrb[0].mxu0
        %v537 = vpop.f32.mrb[0].mxu0
        %v538 = vadd.f32 0.0, %v537
        %v539 = vpop.f32.mrb[0].mxu0
        %540 = vmatprep.mubr.bf16.mxu0 0
        %541 = vmatmul.mubr.bf16.gmra.mrb[0].mxu0 %v451
        %v542 = vpop.f32.mrb[0].mxu0
        %v543 = vadd.f32 0.0, %v542
        %v544 = vpop.f32.mrb[0].mxu0
        %v545 = vpop.f32.mrb[0].mxu0
        %v546 = vadd.f32 0.0, %v545
        %v547 = vpop.f32.mrb[0].mxu0
        %548 = vmatprep.mubr.bf16.mxu0 0
        %549 = vmatmul.mubr.bf16.gmra.mrb[0].mxu0 %v454
        %v550 = vpop.f32.mrb[0].mxu0
        %v551 = vadd.f32 0.0, %v550
        %v552 = vpop.f32.mrb[0].mxu0
        %v553 = vpop.f32.mrb[0].mxu0
        %v554 = vadd.f32 0.0, %v553
        %v555 = vpop.f32.mrb[0].mxu0
        %556 = vdwg.mxu0
        %v573 = vunpack.c.l.b16 %v357
        %v574 = vunpack.c.l.b16 %v358
        %v575 = vunpack.c.l.b16 %v359
        %v576 = vunpack.c.l.b16 %v360
        %v577 = vunpack.c.l.b16 %v361
        %v578 = vunpack.c.l.b16 %v362
        %v579 = vunpack.c.l.b16 %v363
        %v580 = vunpack.c.l.b16 %v364
        %v581 = vunpack.c.l.b16 %v365
        %v582 = vunpack.c.l.b16 %v366
        %v583 = vunpack.c.l.b16 %v367
        %v584 = vunpack.c.l.b16 %v368
        %v585 = vunpack.c.l.b16 %v369
        %v586 = vunpack.c.l.b16 %v370
        %v587 = vunpack.c.l.b16 %v371
        %v588 = vunpack.c.l.b16 %v372
        %v589 = vpack.c.b16 %v574, %v573
        %v590 = vpack.c.b16 %v576, %v575
        %v591 = vpack.c.b16 %v578, %v577
        %v592 = vpack.c.b16 %v580, %v579
        %v593 = vpack.c.b16 %v582, %v581
        %v594 = vpack.c.b16 %v584, %v583
        %v595 = vpack.c.b16 %v586, %v585
        %v596 = vpack.c.b16 %v588, %v587
        %v598 = vsel %vm431, %v589, 0
        %v601 = vsel %vm431, %v590, 0
        %v604 = vsel %vm431, %v591, 0
        %v607 = vsel %vm431, %v592, 0
        %v610 = vsel %vm431, %v593, 0
        %v613 = vsel %vm431, %v594, 0
        %v616 = vsel %vm431, %v595, 0
        %v619 = vsel %vm431, %v596, 0
        %v622 = vsel %vm456, %v389, 0
        %624 = vmatprep.subr.bf16.mxu0 0
        %625 = vmatpush1.bf16.msra.mxu0 %v622
        %626 = vmatprep.subr.bf16.mxu0 0
        %627 = vmatpush1.bf16.msra.mxu0 0
        %628 = vmatprep.subr.bf16.mxu0 0
        %629 = vmatpush1.bf16.msra.mxu0 0
        %630 = vmatprep.subr.bf16.mxu0 0
        %631 = vmatpush1.bf16.msra.mxu0 0
        %632 = vmatprep.subr.bf16.mxu0 0
        %633 = vmatpush1.bf16.msra.mxu0 0
        %634 = vmatprep.subr.bf16.mxu0 0
        %635 = vmatpush1.bf16.msra.mxu0 0
        %636 = vmatprep.subr.bf16.mxu0 0
        %637 = vmatpush1.bf16.msra.mxu0 0
        %638 = vmatprep.subr.bf16.mxu0 0
        %639 = vmatpush1.bf16.msra.mxu0 0
        %640 = vmatprep.subr.bf16.mxu0 0
        %641 = vmatpush1.bf16.msra.mxu0 0
        %642 = vmatprep.subr.bf16.mxu0 0
        %643 = vmatpush1.bf16.msra.mxu0 0
        %644 = vmatprep.subr.bf16.mxu0 0
        %645 = vmatpush1.bf16.msra.mxu0 0
        %646 = vmatprep.subr.bf16.mxu0 0
        %647 = vmatpush1.bf16.msra.mxu0 0
        %648 = vmatprep.subr.bf16.mxu0 0
        %649 = vmatpush1.bf16.msra.mxu0 0
        %650 = vmatprep.subr.bf16.mxu0 0
        %651 = vmatpush1.bf16.msra.mxu0 0
        %652 = vmatprep.subr.bf16.mxu0 0
        %653 = vmatpush1.bf16.msra.mxu0 0
        %654 = vmatprep.subr.bf16.mxu0 0
        %655 = vmatpush1.bf16.msra.mxu0 0
        %656 = vmatprep.mubr.bf16.mxu0 0
        %657 = vmatmul.mubr.bf16.gmra.mrb[0].mxu0 %v598
        %v658 = vpop.f32.mrb[0].mxu0
        %v659 = vadd.f32 %v495, %v658
        %v660 = vpop.f32.mrb[0].mxu0
        %v661 = vpop.f32.mrb[0].mxu0
        %v662 = vadd.f32 %v498, %v661
        %v663 = vpop.f32.mrb[0].mxu0
        %664 = vmatprep.mubr.bf16.mxu0 0
        %665 = vmatmul.mubr.bf16.gmra.mrb[0].mxu0 %v601
        %v666 = vpop.f32.mrb[0].mxu0
        %v667 = vadd.f32 %v503, %v666
        %v668 = vpop.f32.mrb[0].mxu0
        %v669 = vpop.f32.mrb[0].mxu0
        %v670 = vadd.f32 %v506, %v669
        %v671 = vpop.f32.mrb[0].mxu0
        %672 = vmatprep.mubr.bf16.mxu0 0
        %673 = vmatmul.mubr.bf16.gmra.mrb[0].mxu0 %v604
        %v674 = vpop.f32.mrb[0].mxu0
        %v675 = vadd.f32 %v511, %v674
        %v676 = vpop.f32.mrb[0].mxu0
        %v677 = vpop.f32.mrb[0].mxu0
        %v678 = vadd.f32 %v514, %v677
        %v679 = vpop.f32.mrb[0].mxu0
        %680 = vmatprep.mubr.bf16.mxu0 0
        %681 = vmatmul.mubr.bf16.gmra.mrb[0].mxu0 %v607
        %v682 = vpop.f32.mrb[0].mxu0
        %v683 = vadd.f32 %v519, %v682
        %v684 = vpop.f32.mrb[0].mxu0
        %v685 = vpop.f32.mrb[0].mxu0
        %v686 = vadd.f32 %v522, %v685
        %v687 = vpop.f32.mrb[0].mxu0
        %688 = vmatprep.mubr.bf16.mxu0 0
        %689 = vmatmul.mubr.bf16.gmra.mrb[0].mxu0 %v610
        %v690 = vpop.f32.mrb[0].mxu0
        %v691 = vadd.f32 %v527, %v690
        %v692 = vpop.f32.mrb[0].mxu0
        %v693 = vpop.f32.mrb[0].mxu0
        %v694 = vadd.f32 %v530, %v693
        %v695 = vpop.f32.mrb[0].mxu0
        %696 = vmatprep.mubr.bf16.mxu0 0
        %697 = vmatmul.mubr.bf16.gmra.mrb[0].mxu0 %v613
        %v698 = vpop.f32.mrb[0].mxu0
        %v699 = vadd.f32 %v535, %v698
        %v700 = vpop.f32.mrb[0].mxu0
        %v701 = vpop.f32.mrb[0].mxu0
        %v702 = vadd.f32 %v538, %v701
        %v703 = vpop.f32.mrb[0].mxu0
        %704 = vmatprep.mubr.bf16.mxu0 0
        %705 = vmatmul.mubr.bf16.gmra.mrb[0].mxu0 %v616
        %v706 = vpop.f32.mrb[0].mxu0
        %v707 = vadd.f32 %v543, %v706
        %v708 = vpop.f32.mrb[0].mxu0
        %v709 = vpop.f32.mrb[0].mxu0
        %v710 = vadd.f32 %v546, %v709
        %v711 = vpop.f32.mrb[0].mxu0
        %712 = vmatprep.mubr.bf16.mxu0 0
        %713 = vmatmul.mubr.bf16.gmra.mrb[0].mxu0 %v619
        %v714 = vpop.f32.mrb[0].mxu0
        %v715 = vadd.f32 %v551, %v714
        %v716 = vpop.f32.mrb[0].mxu0
        %v717 = vpop.f32.mrb[0].mxu0
        %v718 = vadd.f32 %v554, %v717
        %v719 = vpop.f32.mrb[0].mxu0
        %720 = vdwg.mxu0
        %v721 = vld [vmem:[%s4] sm:$0x1]
        %v723 = vlaneseq
        %v724 = vshrl.u32 %v723, 7
        %v725 = vsub.s32 0, %v724
        %v726 = vrot.slane %v721, %v725
        %v728 = vadd.f32 %v659, %v726
        %v729 = vadd.f32 %v662, %v726
        %v730 = vadd.f32 %v667, %v726
        %v731 = vadd.f32 %v670, %v726
        %v732 = vadd.f32 %v675, %v726
        %v733 = vadd.f32 %v678, %v726
        %v734 = vadd.f32 %v683, %v726
        %v735 = vadd.f32 %v686, %v726
        %v736 = vadd.f32 %v691, %v726
        %v737 = vadd.f32 %v694, %v726
        %v738 = vadd.f32 %v699, %v726
        %v739 = vadd.f32 %v702, %v726
        %v740 = vadd.f32 %v707, %v726
        %v741 = vadd.f32 %v710, %v726
        %v742 = vadd.f32 %v715, %v726
        %v743 = vadd.f32 %v718, %v726
        %v744 = vmax.f32 %v728, 0.0
        %v745 = vmax.f32 %v729, 0.0
        %v746 = vmax.f32 %v730, 0.0
        %v747 = vmax.f32 %v731, 0.0
        %v748 = vmax.f32 %v732, 0.0
        %v749 = vmax.f32 %v733, 0.0
        %v750 = vmax.f32 %v734, 0.0
        %v751 = vmax.f32 %v735, 0.0
        %v752 = vmax.f32 %v736, 0.0
        %v753 = vmax.f32 %v737, 0.0
        %v754 = vmax.f32 %v738, 0.0
        %v755 = vmax.f32 %v739, 0.0
        %v756 = vmax.f32 %v740, 0.0
        %v757 = vmax.f32 %v741, 0.0
        %v758 = vmax.f32 %v742, 0.0
        %v759 = vmax.f32 %v743, 0.0
        %v760 = vpack.c.bf16 %v745, %v744
        %v761 = vpack.c.bf16 %v747, %v746
        %v762 = vpack.c.bf16 %v749, %v748
        %v763 = vpack.c.bf16 %v751, %v750
        %v764 = vpack.c.bf16 %v753, %v752
        %v765 = vpack.c.bf16 %v755, %v754
        %v766 = vpack.c.bf16 %v757, %v756
        %v767 = vpack.c.bf16 %v759, %v758
        %v768 = vld [vmem:[%s5] sm:$0xf]
        %v769 = vld [vmem:[%s5 + $0x4] sm:$0xf]
        %v770 = vld [vmem:[%s5 + $0x8] sm:$0xf]
        %v771 = vld [vmem:[%s5 + $0xc] sm:$0xf]
        %v772 = vld [vmem:[%s5 + $0x10] sm:$0xf]
        %v773 = vld [vmem:[%s5 + $0x14] sm:$0xf]
        %v774 = vld [vmem:[%s5 + $0x18] sm:$0xf]
        %v775 = vld [vmem:[%s5 + $0x1c] sm:$0xf]
        %v776 = vld [vmem:[%s5 + $0x20] sm:$0xf]
        %v777 = vld [vmem:[%s5 + $0x24] sm:$0xf]
        %v778 = vld [vmem:[%s5 + $0x28] sm:$0xf]
        %v779 = vld [vmem:[%s5 + $0x2c] sm:$0xf]
        %v780 = vld [vmem:[%s5 + $0x30] sm:$0xf]
        %v781 = vld [vmem:[%s5 + $0x34] sm:$0xf]
        %v782 = vld [vmem:[%s5 + $0x38] sm:$0xf]
        %v783 = vld [vmem:[%s5 + $0x3c] sm:$0xf]
        %v784 = vld [vmem:[%s6] sm:$0x1]
        %v786 = vlaneseq
        %v787 = vshrl.u32 %v786, 7
        %v788 = vsub.s32 0, %v787
        %v789 = vrot.slane %v784, %v788
        %v807 = vunpack.c.l.b16 %v768
        %v808 = vunpack.c.l.b16 %v769
        %v809 = vunpack.c.l.b16 %v770
        %v810 = vunpack.c.l.b16 %v771
        %v811 = vunpack.c.l.b16 %v772
        %v812 = vunpack.c.l.b16 %v773
        %v813 = vunpack.c.l.b16 %v774
        %v814 = vunpack.c.l.b16 %v775
        %v815 = vunpack.c.l.b16 %v776
        %v816 = vunpack.c.l.b16 %v777
        %v817 = vunpack.c.l.b16 %v778
        %v818 = vunpack.c.l.b16 %v779
        %v819 = vunpack.c.l.b16 %v780
        %v820 = vunpack.c.l.b16 %v781
        %v821 = vunpack.c.l.b16 %v782
        %v822 = vunpack.c.l.b16 %v783
        %v823 = vpack.c.b16 %v808, %v807
        %v824 = vpack.c.b16 %v810, %v809
        %v825 = vpack.c.b16 %v812, %v811
        %v826 = vpack.c.b16 %v814, %v813
        %v827 = vpack.c.b16 %v816, %v815
        %v828 = vpack.c.b16 %v818, %v817
        %v829 = vpack.c.b16 %v820, %v819
        %v830 = vpack.c.b16 %v822, %v821
        %839 = vmatprep.subr.bf16.mxu0 0
        %840 = vmatpush1.bf16.msra.mxu0 %v823
        %841 = vmatprep.subr.bf16.mxu0 0
        %842 = vmatpush1.bf16.msra.mxu0 %v824
        %843 = vmatprep.subr.bf16.mxu0 0
        %844 = vmatpush1.bf16.msra.mxu0 %v825
        %845 = vmatprep.subr.bf16.mxu0 0
        %846 = vmatpush1.bf16.msra.mxu0 %v826
        %847 = vmatprep.subr.bf16.mxu0 0
        %848 = vmatpush1.bf16.msra.mxu0 %v827
        %849 = vmatprep.subr.bf16.mxu0 0
        %850 = vmatpush1.bf16.msra.mxu0 %v828
        %851 = vmatprep.subr.bf16.mxu0 0
        %852 = vmatpush1.bf16.msra.mxu0 %v829
        %853 = vmatprep.subr.bf16.mxu0 0
        %854 = vmatpush1.bf16.msra.mxu0 %v830
        %855 = vmatprep.subr.bf16.mxu0 0
        %856 = vmatpush1.bf16.msra.mxu0 0
        %857 = vmatprep.subr.bf16.mxu0 0
        %858 = vmatpush1.bf16.msra.mxu0 0
        %859 = vmatprep.subr.bf16.mxu0 0
        %860 = vmatpush1.bf16.msra.mxu0 0
        %861 = vmatprep.subr.bf16.mxu0 0
        %862 = vmatpush1.bf16.msra.mxu0 0
        %863 = vmatprep.subr.bf16.mxu0 0
        %864 = vmatpush1.bf16.msra.mxu0 0
        %865 = vmatprep.subr.bf16.mxu0 0
        %866 = vmatpush1.bf16.msra.mxu0 0
        %867 = vmatprep.subr.bf16.mxu0 0
        %868 = vmatpush1.bf16.msra.mxu0 0
        %869 = vmatprep.subr.bf16.mxu0 0
        %870 = vmatpush1.bf16.msra.mxu0 0
        %871 = vmatprep.mubr.bf16.mxu0 0
        %872 = vmatmul.mubr.bf16.gmra.mrb[0].mxu0 %v760
        %v873 = vpop.f32.mrb[0].mxu0
        %v874 = vadd.f32 %v789, %v873
        %v875 = vpop.f32.mrb[0].mxu0
        %v876 = vpop.f32.mrb[0].mxu0
        %v877 = vadd.f32 %v789, %v876
        %v878 = vpop.f32.mrb[0].mxu0
        %879 = vmatprep.mubr.bf16.mxu0 0
        %880 = vmatmul.mubr.bf16.gmra.mrb[0].mxu0 %v761
        %v881 = vpop.f32.mrb[0].mxu0
        %v882 = vadd.f32 %v789, %v881
        %v883 = vpop.f32.mrb[0].mxu0
        %v884 = vpop.f32.mrb[0].mxu0
        %v885 = vadd.f32 %v789, %v884
        %v886 = vpop.f32.mrb[0].mxu0
        %887 = vmatprep.mubr.bf16.mxu0 0
        %888 = vmatmul.mubr.bf16.gmra.mrb[0].mxu0 %v762
        %v889 = vpop.f32.mrb[0].mxu0
        %v890 = vadd.f32 %v789, %v889
        %v891 = vpop.f32.mrb[0].mxu0
        %v892 = vpop.f32.mrb[0].mxu0
        %v893 = vadd.f32 %v789, %v892
        %v894 = vpop.f32.mrb[0].mxu0
        %895 = vmatprep.mubr.bf16.mxu0 0
        %896 = vmatmul.mubr.bf16.gmra.mrb[0].mxu0 %v763
        %v897 = vpop.f32.mrb[0].mxu0
        %v898 = vadd.f32 %v789, %v897
        %v899 = vpop.f32.mrb[0].mxu0
        %v900 = vpop.f32.mrb[0].mxu0
        %v901 = vadd.f32 %v789, %v900
        %v902 = vpop.f32.mrb[0].mxu0
        %903 = vmatprep.mubr.bf16.mxu0 0
        %904 = vmatmul.mubr.bf16.gmra.mrb[0].mxu0 %v764
        %v905 = vpop.f32.mrb[0].mxu0
        %v906 = vadd.f32 %v789, %v905
        %v907 = vpop.f32.mrb[0].mxu0
        %v908 = vpop.f32.mrb[0].mxu0
        %v909 = vadd.f32 %v789, %v908
        %v910 = vpop.f32.mrb[0].mxu0
        %911 = vmatprep.mubr.bf16.mxu0 0
        %912 = vmatmul.mubr.bf16.gmra.mrb[0].mxu0 %v765
        %v913 = vpop.f32.mrb[0].mxu0
        %v914 = vadd.f32 %v789, %v913
        %v915 = vpop.f32.mrb[0].mxu0
        %v916 = vpop.f32.mrb[0].mxu0
        %v917 = vadd.f32 %v789, %v916
        %v918 = vpop.f32.mrb[0].mxu0
        %919 = vmatprep.mubr.bf16.mxu0 0
        %920 = vmatmul.mubr.bf16.gmra.mrb[0].mxu0 %v766
        %v921 = vpop.f32.mrb[0].mxu0
        %v922 = vadd.f32 %v789, %v921
        %v923 = vpop.f32.mrb[0].mxu0
        %v924 = vpop.f32.mrb[0].mxu0
        %v925 = vadd.f32 %v789, %v924
        %v926 = vpop.f32.mrb[0].mxu0
        %927 = vmatprep.mubr.bf16.mxu0 0
        %928 = vmatmul.mubr.bf16.gmra.mrb[0].mxu0 %v767
        %v929 = vpop.f32.mrb[0].mxu0
        %v930 = vadd.f32 %v789, %v929
        %v931 = vpop.f32.mrb[0].mxu0
        %v932 = vpop.f32.mrb[0].mxu0
        %v933 = vadd.f32 %v789, %v932
        %v934 = vpop.f32.mrb[0].mxu0
        %935 = vdwg.mxu0
        %v936 = vmax.f32 %v874, 0.0
        %v937 = vmax.f32 %v877, 0.0
        %v938 = vmax.f32 %v882, 0.0
        %v939 = vmax.f32 %v885, 0.0
        %v940 = vmax.f32 %v890, 0.0
        %v941 = vmax.f32 %v893, 0.0
        %v942 = vmax.f32 %v898, 0.0
        %v943 = vmax.f32 %v901, 0.0
        %v944 = vmax.f32 %v906, 0.0
        %v945 = vmax.f32 %v909, 0.0
        %v946 = vmax.f32 %v914, 0.0
        %v947 = vmax.f32 %v917, 0.0
        %v948 = vmax.f32 %v922, 0.0
        %v949 = vmax.f32 %v925, 0.0
        %v950 = vmax.f32 %v930, 0.0
        %v951 = vmax.f32 %v933, 0.0
        %v952 = vpack.c.bf16 %v937, %v936
        %v953 = vpack.c.bf16 %v939, %v938
        %v954 = vpack.c.bf16 %v941, %v940
        %v955 = vpack.c.bf16 %v943, %v942
        %v956 = vpack.c.bf16 %v945, %v944
        %v957 = vpack.c.bf16 %v947, %v946
        %v958 = vpack.c.bf16 %v949, %v948
        %v959 = vpack.c.bf16 %v951, %v950
        %v960 = vld [vmem:[%s7] sm:$0xf]
        %v961 = vld [vmem:[%s7 + $0x4] sm:$0xf]
        %v962 = vld [vmem:[%s7 + $0x8] sm:$0xf]
        %v963 = vld [vmem:[%s7 + $0xc] sm:$0xf]
        %v964 = vld [vmem:[%s7 + $0x10] sm:$0xf]
        %v965 = vld [vmem:[%s7 + $0x14] sm:$0xf]
        %v966 = vld [vmem:[%s7 + $0x18] sm:$0xf]
        %v967 = vld [vmem:[%s7 + $0x1c] sm:$0xf]
        %v968 = vld [vmem:[%s7 + $0x20] sm:$0xf]
        %v969 = vld [vmem:[%s7 + $0x24] sm:$0xf]
        %v970 = vld [vmem:[%s7 + $0x28] sm:$0xf]
        %v971 = vld [vmem:[%s7 + $0x2c] sm:$0xf]
        %v972 = vld [vmem:[%s7 + $0x30] sm:$0xf]
        %v973 = vld [vmem:[%s7 + $0x34] sm:$0xf]
        %v974 = vld [vmem:[%s7 + $0x38] sm:$0xf]
        %v975 = vld [vmem:[%s7 + $0x3c] sm:$0xf]
        %v976 = vld [vmem:[%s8] sm:$0x1]
        %v978 = vlaneseq
        %v979 = vshrl.u32 %v978, 7
        %v980 = vsub.s32 0, %v979
        %v981 = vrot.slane %v976, %v980
        %v999 = vunpack.c.l.b16 %v960
        %v1000 = vunpack.c.l.b16 %v961
        %v1001 = vunpack.c.l.b16 %v962
        %v1002 = vunpack.c.l.b16 %v963
        %v1003 = vunpack.c.l.b16 %v964
        %v1004 = vunpack.c.l.b16 %v965
        %v1005 = vunpack.c.l.b16 %v966
        %v1006 = vunpack.c.l.b16 %v967
        %v1007 = vunpack.c.l.b16 %v968
        %v1008 = vunpack.c.l.b16 %v969
        %v1009 = vunpack.c.l.b16 %v970
        %v1010 = vunpack.c.l.b16 %v971
        %v1011 = vunpack.c.l.b16 %v972
        %v1012 = vunpack.c.l.b16 %v973
        %v1013 = vunpack.c.l.b16 %v974
        %v1014 = vunpack.c.l.b16 %v975
        %v1015 = vpack.c.b16 %v1000, %v999
        %v1016 = vpack.c.b16 %v1002, %v1001
        %v1017 = vpack.c.b16 %v1004, %v1003
        %v1018 = vpack.c.b16 %v1006, %v1005
        %v1019 = vpack.c.b16 %v1008, %v1007
        %v1020 = vpack.c.b16 %v1010, %v1009
        %v1021 = vpack.c.b16 %v1012, %v1011
        %v1022 = vpack.c.b16 %v1014, %v1013
        %1031 = vmatprep.subr.bf16.mxu0 0
        %1032 = vmatpush1.bf16.msra.mxu0 %v1015
        %1033 = vmatprep.subr.bf16.mxu0 0
        %1034 = vmatpush1.bf16.msra.mxu0 %v1016
        %1035 = vmatprep.subr.bf16.mxu0 0
        %1036 = vmatpush1.bf16.msra.mxu0 %v1017
        %1037 = vmatprep.subr.bf16.mxu0 0
        %1038 = vmatpush1.bf16.msra.mxu0 %v1018
        %1039 = vmatprep.subr.bf16.mxu0 0
        %1040 = vmatpush1.bf16.msra.mxu0 %v1019
        %1041 = vmatprep.subr.bf16.mxu0 0
        %1042 = vmatpush1.bf16.msra.mxu0 %v1020
        %1043 = vmatprep.subr.bf16.mxu0 0
        %1044 = vmatpush1.bf16.msra.mxu0 %v1021
        %1045 = vmatprep.subr.bf16.mxu0 0
        %1046 = vmatpush1.bf16.msra.mxu0 %v1022
        %1047 = vmatprep.subr.bf16.mxu0 0
        %1048 = vmatpush1.bf16.msra.mxu0 0
        %1049 = vmatprep.subr.bf16.mxu0 0
        %1050 = vmatpush1.bf16.msra.mxu0 0
        %1051 = vmatprep.subr.bf16.mxu0 0
        %1052 = vmatpush1.bf16.msra.mxu0 0
        %1053 = vmatprep.subr.bf16.mxu0 0
        %1054 = vmatpush1.bf16.msra.mxu0 0
        %1055 = vmatprep.subr.bf16.mxu0 0
        %1056 = vmatpush1.bf16.msra.mxu0 0
        %1057 = vmatprep.subr.bf16.mxu0 0
        %1058 = vmatpush1.bf16.msra.mxu0 0
        %1059 = vmatprep.subr.bf16.mxu0 0
        %1060 = vmatpush1.bf16.msra.mxu0 0
        %1061 = vmatprep.subr.bf16.mxu0 0
        %1062 = vmatpush1.bf16.msra.mxu0 0
        %1063 = vmatprep.mubr.bf16.mxu0 0
        %1064 = vmatmul.mubr.bf16.gmra.mrb[0].mxu0 %v952
        %v1065 = vpop.f32.mrb[0].mxu0
        %v1066 = vadd.f32 %v981, %v1065
        %v1067 = vpop.f32.mrb[0].mxu0
        %v1068 = vpop.f32.mrb[0].mxu0
        %v1069 = vadd.f32 %v981, %v1068
        %v1070 = vpop.f32.mrb[0].mxu0
        %1071 = vmatprep.mubr.bf16.mxu0 0
        %1072 = vmatmul.mubr.bf16.gmra.mrb[0].mxu0 %v953
        %v1073 = vpop.f32.mrb[0].mxu0
        %v1074 = vadd.f32 %v981, %v1073
        %v1075 = vpop.f32.mrb[0].mxu0
        %v1076 = vpop.f32.mrb[0].mxu0
        %v1077 = vadd.f32 %v981, %v1076
        %v1078 = vpop.f32.mrb[0].mxu0
        %1079 = vmatprep.mubr.bf16.mxu0 0
        %1080 = vmatmul.mubr.bf16.gmra.mrb[0].mxu0 %v954
        %v1081 = vpop.f32.mrb[0].mxu0
        %v1082 = vadd.f32 %v981, %v1081
        %v1083 = vpop.f32.mrb[0].mxu0
        %v1084 = vpop.f32.mrb[0].mxu0
        %v1085 = vadd.f32 %v981, %v1084
        %v1086 = vpop.f32.mrb[0].mxu0
        %1087 = vmatprep.mubr.bf16.mxu0 0
        %1088 = vmatmul.mubr.bf16.gmra.mrb[0].mxu0 %v955
        %v1089 = vpop.f32.mrb[0].mxu0
        %v1090 = vadd.f32 %v981, %v1089
        %v1091 = vpop.f32.mrb[0].mxu0
        %v1092 = vpop.f32.mrb[0].mxu0
        %v1093 = vadd.f32 %v981, %v1092
        %v1094 = vpop.f32.mrb[0].mxu0
        %1095 = vmatprep.mubr.bf16.mxu0 0
        %1096 = vmatmul.mubr.bf16.gmra.mrb[0].mxu0 %v956
        %v1097 = vpop.f32.mrb[0].mxu0
        %v1098 = vadd.f32 %v981, %v1097
        %v1099 = vpop.f32.mrb[0].mxu0
        %v1100 = vpop.f32.mrb[0].mxu0
        %v1101 = vadd.f32 %v981, %v1100
        %v1102 = vpop.f32.mrb[0].mxu0
        %1103 = vmatprep.mubr.bf16.mxu0 0
        %1104 = vmatmul.mubr.bf16.gmra.mrb[0].mxu0 %v957
        %v1105 = vpop.f32.mrb[0].mxu0
        %v1106 = vadd.f32 %v981, %v1105
        %v1107 = vpop.f32.mrb[0].mxu0
        %v1108 = vpop.f32.mrb[0].mxu0
        %v1109 = vadd.f32 %v981, %v1108
        %v1110 = vpop.f32.mrb[0].mxu0
        %1111 = vmatprep.mubr.bf16.mxu0 0
        %1112 = vmatmul.mubr.bf16.gmra.mrb[0].mxu0 %v958
        %v1113 = vpop.f32.mrb[0].mxu0
        %v1114 = vadd.f32 %v981, %v1113
        %v1115 = vpop.f32.mrb[0].mxu0
        %v1116 = vpop.f32.mrb[0].mxu0
        %v1117 = vadd.f32 %v981, %v1116
        %v1118 = vpop.f32.mrb[0].mxu0
        %1119 = vmatprep.mubr.bf16.mxu0 0
        %1120 = vmatmul.mubr.bf16.gmra.mrb[0].mxu0 %v959
        %v1121 = vpop.f32.mrb[0].mxu0
        %v1122 = vadd.f32 %v981, %v1121
        %v1123 = vpop.f32.mrb[0].mxu0
        %v1124 = vpop.f32.mrb[0].mxu0
        %v1125 = vadd.f32 %v981, %v1124
        %v1126 = vpop.f32.mrb[0].mxu0
        %1127 = vdwg.mxu0
        %1128 = vst [vmem:[%s342] sm:$0xff] %v1066
        %1129 = vst [vmem:[%s342 + $0x8] sm:$0xff] %v1069
        %1130 = vst [vmem:[%s342 + $0x10] sm:$0xff] %v1074
        %1131 = vst [vmem:[%s342 + $0x18] sm:$0xff] %v1077
        %1132 = vst [vmem:[%s342 + $0x20] sm:$0xff] %v1082
        %1133 = vst [vmem:[%s342 + $0x28] sm:$0xff] %v1085
        %1134 = vst [vmem:[%s342 + $0x30] sm:$0xff] %v1090
        %1135 = vst [vmem:[%s342 + $0x38] sm:$0xff] %v1093
        %1136 = vst [vmem:[%s342 + $0x40] sm:$0xff] %v1098
        %1137 = vst [vmem:[%s342 + $0x48] sm:$0xff] %v1101
        %1138 = vst [vmem:[%s342 + $0x50] sm:$0xff] %v1106
        %1139 = vst [vmem:[%s342 + $0x58] sm:$0xff] %v1109
        %1140 = vst [vmem:[%s342 + $0x60] sm:$0xff] %v1114
        %1141 = vst [vmem:[%s342 + $0x68] sm:$0xff] %v1117
        %1142 = vst [vmem:[%s342 + $0x70] sm:$0xff] %v1122
        %1143 = vst [vmem:[%s342 + $0x78] sm:$0xff] %v1125
        %s1144 = sand.u32 %s230, 1
        %s1145 = scalar_lea.sflag [#allocation3], %s1144
        %s1146 = sand.u32 %s230, 1
        %s1147 = smul.addr %s1146, 128
        %s1148 = scalar_lea.vmem [#allocation2], %s1147
        // Predicated region
        $region57: #{tpu_custom_call.1} parent=55 // pred_check
          %p1149 = pneg %p240
        $region58: #{tpu_custom_call.1} parent=55 // pred_check_branch
          %1151 = sbr.rel (%p1149) target = $region60
        $region59: #{tpu_custom_call.1} parent=55 // pred_region
          %s1152 = smul.u32 16, %s23
          %s1154 = ssub.s32 2048, 2048
          %1155 = vsyncadd %s1145, %s1154
          %s1156 = smul.addr %s1152, 128
          %s1157 = scalar_lea.hbm %s9, %s1156
          %s1158 = sshll.u32 %s1148, 4
          %s1159 = int_to_ptr.vmem [resolvable:$true] %s1158
          %1164 = dma.vmem_to_hbm [thread:$0]  %s1159, 2048, %s1157, %s1145, 128, 128, 8
        $region60: #{tpu_custom_call.1} parent=55 // pred_fallthru
          _
      $region56: #{tpu_custom_call.1} parent=5 // pred_fallthru
        _
      %p1165 = scmp.le.s32.totalorder 2, %s18
      // Predicated region
      $region61: #{tpu_custom_call.1} parent=5 // pred_check
        %p1166 = pneg %p1165
      $region62: #{tpu_custom_call.1} parent=5 // pred_check_branch
        %1168 = sbr.rel (%p1166) target = $region64
      $region63: #{tpu_custom_call.1} parent=5 // pred_region
        %s1169 = ssub.s32 %s18, 2
        // Predicated region
        $region65: #{tpu_custom_call.1} parent=63 // pred_check
          %p1170 = pneg %p246
        $region66: #{tpu_custom_call.1} parent=63 // pred_check_branch
          %1172 = sbr.rel (%p1170) target = $region68
        $region67: #{tpu_custom_call.1} parent=63 // pred_region
          %s1173 = sand.u32 %s231, 1
          %s1174 = scalar_lea.sflag [#allocation3], %s1173
          %s1175 = sand.u32 %s231, 1
          %s1176 = smul.addr %s1175, 128
          %s1177 = scalar_lea.vmem [#allocation2], %s1176
          %1178 = dma.done %s1174, 2048
        $region68: #{tpu_custom_call.1} parent=63 // pred_fallthru
          _
      $region64: #{tpu_custom_call.1} parent=5 // pred_fallthru
        _
    $region6: #{tpu_custom_call.1} parent=1 // loop_footer
      %s22 = sadd.s32 1, %s18
    $region7: #{tpu_custom_call.1} parent=1 // loop_footer_branch
      %17 = sbr.rel target = $region3
    $region8: #{tpu_custom_call.1} parent=1 // loop_exit
      _
    %1179 = vsyncpa [#allocation3], 1
    %s1180 = scalar_lea.sflag [#allocation3], 1
    %1181 = vsyncpa %s1180, 1

</llo_original>
